<compile_context>
chip_gen: v6e
topology: v6e:2x2x1
jax: 0.10.0
libtpu: 0.0.40
codegen_flags: <defaults>
</compile_context>

<pallas_src>
import functools

import jax
import jax.numpy as jnp
from jax.experimental import pallas as pl
from jax.experimental.pallas import tpu as pltpu

LANES = 128
SUBLANES = 8


def _dice_partials_kernel(pred_ref, tgt_ref, out_ref, *, cpc, grid_n,
                          tile_rows, last_valid):
    """Accumulates per-core partial sums of sigmoid(p)*t and sigmoid(p)+t."""
    c = pl.program_id(0)            # core-split index ("parallel" axis)
    i = pl.program_id(1)            # chunk index within this core ("arbitrary")
    chunk = c * cpc + i             # global chunk index
    tile_elems = tile_rows * LANES

    @pl.when(i == 0)
    def _init():
        out_ref[...] = jnp.zeros_like(out_ref)

    def accumulate(valid_count):
        p = jax.nn.sigmoid(pred_ref[...].astype(jnp.float32))
        t = tgt_ref[...].astype(jnp.float32)
        if valid_count < tile_elems:
            # Tail mask for the final chunk: covers the partial grid block
            # (OOB rows hold unspecified data) and any <128-elem wrapper pad.
            # Applied after the sigmoid so masked positions contribute 0.
            row = jax.lax.broadcasted_iota(jnp.int32, (tile_rows, LANES), 0)
            lane = jax.lax.broadcasted_iota(jnp.int32, (tile_rows, LANES), 1)
            valid = row * LANES + lane < valid_count
            p = jnp.where(valid, p, 0.0)
            t = jnp.where(valid, t, 0.0)
        inter = p * t
        denom = p + t
        # Fold (tile_rows, 128) -> (8, 128) partials with elementwise vreg
        # adds only (axis-0 reduction of a layout-preserving reshape); the
        # cross-lane reduction happens once, in the wrapper.
        out_ref[0, 0] += jnp.sum(inter.reshape(-1, SUBLANES, LANES), axis=0)
        out_ref[0, 1] += jnp.sum(denom.reshape(-1, SUBLANES, LANES), axis=0)

    @pl.when(chunk < grid_n - 1)
    def _full():
        accumulate(tile_elems)

    @pl.when(chunk == grid_n - 1)
    def _last():
        accumulate(last_valid)
    # chunk > grid_n - 1: overflow chunk from rounding grid_n up to a multiple
    # of the core split; its (clamped, duplicate) input read contributes
    # nothing because neither branch above fires.


def dice_loss(pred, target, *, tile_rows=1024, num_core_splits=2):
    """Pallas implementation of DiceLoss.forward(pred, target)."""
    smooth = 1e-08

    pred_flat = pred.reshape(-1)
    tgt_flat = target.reshape(-1)
    n = pred_flat.shape[0]

    # The (M, 128) view needs numel % 128 == 0.  Typical NCHW shapes satisfy
    # this (no copy); otherwise pad by < 128 elements (masked out in-kernel,
    # so the pad value is irrelevant).
    rem = n % LANES
    if rem:
        pad = LANES - rem
        pred_flat = jnp.pad(pred_flat, (0, pad))
        tgt_flat = jnp.pad(tgt_flat, (0, pad))
    m = pred_flat.shape[0] // LANES
    pred2d = pred_flat.reshape(m, LANES)
    tgt2d = tgt_flat.reshape(m, LANES)

    # Clamp the tile for tiny inputs; keep a multiple of 32 rows so packed
    # input dtypes (bf16 / int8 targets) still satisfy sublane tiling.
    tr = min(tile_rows, ((m + 31) // 32) * 32)
    grid_n = pl.cdiv(m, tr)                        # number of real chunks
    ncores = max(1, min(num_core_splits, grid_n))  # parallel splits (v7x: 2 TC)
    cpc = pl.cdiv(grid_n, ncores)                  # chunks per core split
    last_valid = n - (grid_n - 1) * tr * LANES     # real elems in last chunk

    kernel = functools.partial(
        _dice_partials_kernel,
        cpc=cpc, grid_n=grid_n, tile_rows=tr, last_valid=last_valid)

    def in_map(c, i):
        # Clamp overflow chunks (from rounding grid_n up to ncores*cpc) onto
        # the last real block; the kernel skips their contribution.
        return (jnp.minimum(c * cpc + i, grid_n - 1), 0)

    partials = pl.pallas_call(
        kernel,
        out_shape=jax.ShapeDtypeStruct((ncores, 2, SUBLANES, LANES),
                                       jnp.float32),
        grid_spec=pltpu.PrefetchScalarGridSpec(
            num_scalar_prefetch=0,
            grid=(ncores, cpc),
            in_specs=[
                pl.BlockSpec((tr, LANES), in_map),
                pl.BlockSpec((tr, LANES), in_map),
            ],
            out_specs=pl.BlockSpec((1, 2, SUBLANES, LANES),
                                   lambda c, i: (c, 0, 0, 0)),
        ),
        compiler_params=pltpu.CompilerParams(
            dimension_semantics=("parallel", "arbitrary")),
    )(pred2d, tgt2d)

    # Final (one-shot) cross-lane reductions + scalar combine in plain JAX.
    intersection = jnp.sum(partials[:, 0])
    denom = jnp.sum(partials[:, 1])          # = pred.sum() + target.sum()
    return 1.0 - (2.0 * intersection + smooth) / (denom + smooth)


def _reference(pred, target):
    smooth = 1e-08
    p = jax.nn.sigmoid(pred).reshape(-1)
    t = target.reshape(-1)
    inter = jnp.sum(p * t)
    return 1.0 - (2.0 * inter + smooth) / (jnp.sum(p) + jnp.sum(t) + smooth)


if __name__ == "__main__":
    key = jax.random.PRNGKey(0)
    k1, k2 = jax.random.split(key)
    # Segmentation-style inputs: logits and binary targets, NCHW.
    pred = jax.random.normal(k1, (2, 4, 16, 16), dtype=jnp.float32)
    target = (jax.random.uniform(k2, (2, 4, 16, 16)) > 0.5).astype(jnp.float32)

    loss = jax.block_until_ready(dice_loss(pred, target))
    ref = jax.block_until_ready(_reference(pred, target))
    assert jnp.allclose(loss, ref, atol=1e-5, rtol=1e-5), (loss, ref)
    print("KERNEL_OK")
</pallas_src>

<mosaic_0001>
module attributes {stable_mosaic.version = 11 : i64} {
  func.func @_dice_partials_kernel(%arg0: i32, %arg1: i32, %arg2: memref<32x128xf32, #tpu.memory_space<vmem>>, %arg3: memref<32x128xf32, #tpu.memory_space<vmem>>, %arg4: memref<1x2x8x128xf32, #tpu.memory_space<vmem>>) attributes {dimension_semantics = [#tpu.dimension_semantics<parallel>, #tpu.dimension_semantics<arbitrary>], iteration_bounds = array<i64: 1, 1>, scalar_prefetch = 0 : i64, scratch_operands = 0 : i64, tpu.core_type = #tpu.core_type<tc>, window_params = [{transform_indices = @transform_0, window_bounds = array<i64: 32, 128>}, {transform_indices = @transform_1, window_bounds = array<i64: 32, 128>}, {transform_indices = @transform_2, window_bounds = array<i64: 1, 2, 8, 128>}]} {
    %c1_i32 = arith.constant 1 : i32
    %0 = arith.muli %arg0, %c1_i32 : i32
    %1 = arith.addi %0, %arg1 : i32
    %c0_i32 = arith.constant 0 : i32
    %2 = arith.cmpi eq, %arg1, %c0_i32 : i32
    %3 = arith.extui %2 : i1 to i32
    %c0_i32_0 = arith.constant 0 : i32
    %4 = arith.cmpi ne, %3, %c0_i32_0 : i32
    scf.if %4 {
      %cst = arith.constant 0.000000e+00 : f32
      %11 = vector.broadcast %cst : f32 to vector<1x2x8x128xf32>
      %c0 = arith.constant 0 : index
      %c0_5 = arith.constant 0 : index
      %c0_6 = arith.constant 0 : index
      %c0_7 = arith.constant 0 : index
      %12 = vector.load %arg4[%c0, %c0_5, %c0_6, %c0_7] : memref<1x2x8x128xf32, #tpu.memory_space<vmem>>, vector<1x2x8x128xf32>
      tpu.vector_store %arg4[%c0, %c0_5, %c0_6, %c0_7], %11 {strides = array<i32>} : memref<1x2x8x128xf32, #tpu.memory_space<vmem>>, vector<1x2x8x128xf32>,
    } else {
    }
    %c0_i32_1 = arith.constant 0 : i32
    %5 = arith.cmpi slt, %1, %c0_i32_1 : i32
    %6 = arith.extui %5 : i1 to i32
    %c0_i32_2 = arith.constant 0 : i32
    %7 = arith.cmpi ne, %6, %c0_i32_2 : i32
    scf.if %7 {
      %c0 = arith.constant 0 : index
      %c0_5 = arith.constant 0 : index
      %11 = vector.load %arg2[%c0, %c0_5] : memref<32x128xf32, #tpu.memory_space<vmem>>, vector<32x128xf32>
      %12 = arith.negf %11 : vector<32x128xf32>
      %13 = math.exp %12 : vector<32x128xf32>
      %cst = arith.constant 1.000000e+00 : f32
      %14 = vector.broadcast %cst : f32 to vector<32x128xf32>
      %15 = arith.addf %14, %13 : vector<32x128xf32>
      %16 = arith.divf %14, %15 : vector<32x128xf32>
      %c0_6 = arith.constant 0 : index
      %c0_7 = arith.constant 0 : index
      %17 = vector.load %arg3[%c0_6, %c0_7] : memref<32x128xf32, #tpu.memory_space<vmem>>, vector<32x128xf32>
      %18 = arith.mulf %16, %17 : vector<32x128xf32>
      %19 = arith.addf %16, %17 : vector<32x128xf32>
      %c0_8 = arith.constant 0 : index
      %c0_9 = arith.constant 0 : index
      %c0_10 = arith.constant 0 : index
      %c0_11 = arith.constant 0 : index
      %20 = vector.load %arg4[%c0_8, %c0_9, %c0_10, %c0_11] : memref<1x2x8x128xf32, #tpu.memory_space<vmem>>, vector<1x1x8x128xf32>
      %21 = vector.shape_cast %20 : vector<1x1x8x128xf32> to vector<8x128xf32>
      %22 = vector.shape_cast %18 : vector<32x128xf32> to vector<4x8x128xf32>
      %cst_12 = arith.constant dense<0.000000e+00> : vector<8x128xf32>
      %23 = vector.multi_reduction <add>, %22, %cst_12 [0] : vector<4x8x128xf32> to vector<8x128xf32>
      %24 = arith.addf %21, %23 : vector<8x128xf32>
      %c0_13 = arith.constant 0 : index
      %c0_14 = arith.constant 0 : index
      %c0_15 = arith.constant 0 : index
      %c0_16 = arith.constant 0 : index
      %25 = vector.load %arg4[%c0_13, %c0_14, %c0_15, %c0_16] : memref<1x2x8x128xf32, #tpu.memory_space<vmem>>, vector<1x1x8x128xf32>
      %26 = vector.shape_cast %25 : vector<1x1x8x128xf32> to vector<8x128xf32>
      %27 = vector.shape_cast %24 : vector<8x128xf32> to vector<1x1x8x128xf32>
      tpu.vector_store %arg4[%c0_13, %c0_14, %c0_15, %c0_16], %27 {strides = array<i32>} : memref<1x2x8x128xf32, #tpu.memory_space<vmem>>, vector<1x1x8x128xf32>,
      %c0_17 = arith.constant 0 : index
      %c1 = arith.constant 1 : index
      %c0_18 = arith.constant 0 : index
      %c0_19 = arith.constant 0 : index
      %28 = vector.load %arg4[%c0_17, %c1, %c0_18, %c0_19] : memref<1x2x8x128xf32, #tpu.memory_space<vmem>>, vector<1x1x8x128xf32>
      %29 = vector.shape_cast %28 : vector<1x1x8x128xf32> to vector<8x128xf32>
      %30 = vector.shape_cast %19 : vector<32x128xf32> to vector<4x8x128xf32>
      %cst_20 = arith.constant dense<0.000000e+00> : vector<8x128xf32>
      %31 = vector.multi_reduction <add>, %30, %cst_20 [0] : vector<4x8x128xf32> to vector<8x128xf32>
      %32 = arith.addf %29, %31 : vector<8x128xf32>
      %c0_21 = arith.constant 0 : index
      %c1_22 = arith.constant 1 : index
      %c0_23 = arith.constant 0 : index
      %c0_24 = arith.constant 0 : index
      %33 = vector.load %arg4[%c0_21, %c1_22, %c0_23, %c0_24] : memref<1x2x8x128xf32, #tpu.memory_space<vmem>>, vector<1x1x8x128xf32>
      %34 = vector.shape_cast %33 : vector<1x1x8x128xf32> to vector<8x128xf32>
      %35 = vector.shape_cast %32 : vector<8x128xf32> to vector<1x1x8x128xf32>
      tpu.vector_store %arg4[%c0_21, %c1_22, %c0_23, %c0_24], %35 {strides = array<i32>} : memref<1x2x8x128xf32, #tpu.memory_space<vmem>>, vector<1x1x8x128xf32>,
    } else {
    }
    %c0_i32_3 = arith.constant 0 : i32
    %8 = arith.cmpi eq, %1, %c0_i32_3 : i32
    %9 = arith.extui %8 : i1 to i32
    %c0_i32_4 = arith.constant 0 : i32
    %10 = arith.cmpi ne, %9, %c0_i32_4 : i32
    scf.if %10 {
      %c0 = arith.constant 0 : index
      %c0_5 = arith.constant 0 : index
      %11 = vector.load %arg2[%c0, %c0_5] : memref<32x128xf32, #tpu.memory_space<vmem>>, vector<32x128xf32>
      %12 = arith.negf %11 : vector<32x128xf32>
      %13 = math.exp %12 : vector<32x128xf32>
      %cst = arith.constant 1.000000e+00 : f32
      %14 = vector.broadcast %cst : f32 to vector<32x128xf32>
      %15 = arith.addf %14, %13 : vector<32x128xf32>
      %16 = arith.divf %14, %15 : vector<32x128xf32>
      %c0_6 = arith.constant 0 : index
      %c0_7 = arith.constant 0 : index
      %17 = vector.load %arg3[%c0_6, %c0_7] : memref<32x128xf32, #tpu.memory_space<vmem>>, vector<32x128xf32>
      %18 = tpu.iota {dimensions = array<i32: 0>} : vector<32x128xi32>
      %19 = tpu.iota {dimensions = array<i32: 1>} : vector<32x128xi32>
      %c128_i32 = arith.constant 128 : i32
      %20 = vector.broadcast %c128_i32 : i32 to vector<32x128xi32>
      %21 = arith.muli %18, %20 : vector<32x128xi32>
      %22 = arith.addi %21, %19 : vector<32x128xi32>
      %c2048_i32 = arith.constant 2048 : i32
      %23 = vector.broadcast %c2048_i32 : i32 to vector<32x128xi32>
      %24 = arith.cmpi slt, %22, %23 : vector<32x128xi32>
      %cst_8 = arith.constant 0.000000e+00 : f32
      %25 = vector.broadcast %cst_8 : f32 to vector<32x128xf32>
      %26 = arith.select %24, %16, %25 : vector<32x128xi1>, vector<32x128xf32>
      %cst_9 = arith.constant 0.000000e+00 : f32
      %27 = vector.broadcast %cst_9 : f32 to vector<32x128xf32>
      %28 = arith.select %24, %17, %27 : vector<32x128xi1>, vector<32x128xf32>
      %29 = arith.mulf %26, %28 : vector<32x128xf32>
      %30 = arith.addf %26, %28 : vector<32x128xf32>
      %c0_10 = arith.constant 0 : index
      %c0_11 = arith.constant 0 : index
      %c0_12 = arith.constant 0 : index
      %c0_13 = arith.constant 0 : index
      %31 = vector.load %arg4[%c0_10, %c0_11, %c0_12, %c0_13] : memref<1x2x8x128xf32, #tpu.memory_space<vmem>>, vector<1x1x8x128xf32>
      %32 = vector.shape_cast %31 : vector<1x1x8x128xf32> to vector<8x128xf32>
      %33 = vector.shape_cast %29 : vector<32x128xf32> to vector<4x8x128xf32>
      %cst_14 = arith.constant dense<0.000000e+00> : vector<8x128xf32>
      %34 = vector.multi_reduction <add>, %33, %cst_14 [0] : vector<4x8x128xf32> to vector<8x128xf32>
      %35 = arith.addf %32, %34 : vector<8x128xf32>
      %c0_15 = arith.constant 0 : index
      %c0_16 = arith.constant 0 : index
      %c0_17 = arith.constant 0 : index
      %c0_18 = arith.constant 0 : index
      %36 = vector.load %arg4[%c0_15, %c0_16, %c0_17, %c0_18] : memref<1x2x8x128xf32, #tpu.memory_space<vmem>>, vector<1x1x8x128xf32>
      %37 = vector.shape_cast %36 : vector<1x1x8x128xf32> to vector<8x128xf32>
      %38 = vector.shape_cast %35 : vector<8x128xf32> to vector<1x1x8x128xf32>
      tpu.vector_store %arg4[%c0_15, %c0_16, %c0_17, %c0_18], %38 {strides = array<i32>} : memref<1x2x8x128xf32, #tpu.memory_space<vmem>>, vector<1x1x8x128xf32>,
      %c0_19 = arith.constant 0 : index
      %c1 = arith.constant 1 : index
      %c0_20 = arith.constant 0 : index
      %c0_21 = arith.constant 0 : index
      %39 = vector.load %arg4[%c0_19, %c1, %c0_20, %c0_21] : memref<1x2x8x128xf32, #tpu.memory_space<vmem>>, vector<1x1x8x128xf32>
      %40 = vector.shape_cast %39 : vector<1x1x8x128xf32> to vector<8x128xf32>
      %41 = vector.shape_cast %30 : vector<32x128xf32> to vector<4x8x128xf32>
      %cst_22 = arith.constant dense<0.000000e+00> : vector<8x128xf32>
      %42 = vector.multi_reduction <add>, %41, %cst_22 [0] : vector<4x8x128xf32> to vector<8x128xf32>
      %43 = arith.addf %40, %42 : vector<8x128xf32>
      %c0_23 = arith.constant 0 : index
      %c1_24 = arith.constant 1 : index
      %c0_25 = arith.constant 0 : index
      %c0_26 = arith.constant 0 : index
      %44 = vector.load %arg4[%c0_23, %c1_24, %c0_25, %c0_26] : memref<1x2x8x128xf32, #tpu.memory_space<vmem>>, vector<1x1x8x128xf32>
      %45 = vector.shape_cast %44 : vector<1x1x8x128xf32> to vector<8x128xf32>
      %46 = vector.shape_cast %43 : vector<8x128xf32> to vector<1x1x8x128xf32>
      tpu.vector_store %arg4[%c0_23, %c1_24, %c0_25, %c0_26], %46 {strides = array<i32>} : memref<1x2x8x128xf32, #tpu.memory_space<vmem>>, vector<1x1x8x128xf32>,
    } else {
    }
    return
  }
  func.func @transform_0(%arg0: i32, %arg1: i32) -> (i32, i32) {
    %c1_i32 = arith.constant 1 : i32
    %0 = arith.muli %arg0, %c1_i32 : i32
    %1 = arith.addi %0, %arg1 : i32
    %c0_i32 = arith.constant 0 : i32
    %2 = arith.minsi %1, %c0_i32 : i32
    %c0_i32_0 = arith.constant 0 : i32
    %c0_i32_1 = arith.constant 0 : i32
    return %2, %c0_i32_0 : i32, i32
  }
  func.func @transform_1(%arg0: i32, %arg1: i32) -> (i32, i32) {
    %c1_i32 = arith.constant 1 : i32
    %0 = arith.muli %arg0, %c1_i32 : i32
    %1 = arith.addi %0, %arg1 : i32
    %c0_i32 = arith.constant 0 : i32
    %2 = arith.minsi %1, %c0_i32 : i32
    %c0_i32_0 = arith.constant 0 : i32
    %c0_i32_1 = arith.constant 0 : i32
    return %2, %c0_i32_0 : i32, i32
  }
  func.func @transform_2(%arg0: i32, %arg1: i32) -> (i32, i32, i32, i32) {
    %c0_i32 = arith.constant 0 : i32
    %c0_i32_0 = arith.constant 0 : i32
    %c0_i32_1 = arith.constant 0 : i32
    %c0_i32_2 = arith.constant 0 : i32
    return %arg0, %c0_i32, %c0_i32_0, %c0_i32_1 : i32, i32, i32, i32
  }
}

</mosaic_0001>

<llo_original>
// kernel: tpu_custom_call.1
$region0: #{tpu_custom_call.1}
  #allocation0 [shape = 'u32[]', space=smem, size = 0x4, offset = 0x4, fixed_abs, tag = 'smem constant byte address 0x4 - core index']
  #allocation1 [shape = 'u32[144,128]{1,0:T(1,128)}', space=vmem, size = 0x12000, scoped, tag = 'internal scratch']
  %s0 = inlined_call_operand.hbm [shape: f32[16,128], index: 0, kind: input, shape index: {}]
  %s1 = inlined_call_operand.hbm [shape: f32[16,128], index: 1, kind: input, shape index: {}]
  %s2 = inlined_call_operand.hbm [shape: f32[1,2,8,128], index: 2, kind: output, shape index: {}]
  %s3 = sld [smem:[#allocation0]]
  $region38: #{tpu_custom_call.1} parent=0
    _
  %s5 = ssub.s32 1, %s3
  %s6 = scalar_select 0, %s5, %s3
  $region1: #{tpu_custom_call.1} parent=0
    #allocation2 [shape = 'u8[16384]{0}', space=vmem, size = 0x4000, scoped, tag = 'input window, operand 0, single buffered']
    #allocation3 [shape = 's32[1]{0}', space=sflag, size = 0x4, scoped, tag = 'scoped memory for tpu_custom_call.1']
    #allocation4 [shape = 's32[1]{0}', space=sflag, size = 0x4, scoped, tag = 'scoped memory for tpu_custom_call.1']
    #allocation5 [shape = 'u8[16384]{0}', space=vmem, size = 0x4000, scoped, tag = 'input window, operand 1, single buffered']
    #allocation6 [shape = 's32[1]{0}', space=sflag, size = 0x4, scoped, tag = 'scoped memory for tpu_custom_call.1']
    #allocation7 [shape = 'u8[8192]{0}', space=vmem, size = 0x2000, scoped, tag = 'output window, operand 0, single buffered']
    %7 = vsyncpa [#allocation3], 0
    %8 = vsyncpa [#allocation6], 0
    %9 = vsyncpa [#allocation4], 0
    // Predicated region
    $region2: #{tpu_custom_call.1} parent=1 // pred_check
      _
    $region3: #{tpu_custom_call.1} parent=1 // pred_check_branch
      %11 = sbr.rel (0) target = $region5
    $region4: #{tpu_custom_call.1} parent=1 // pred_region
      %s12 = sadd.s32 0, 0
      %p13 = scmp.lt.s32.totalorder %s12, 0
      %s14 = scalar_select %p13, %s12, 0
      %s15 = smul.u32 4, %s14
      %s16 = ssub.s32 2, %s15
      %s17 = smul.u32 128, %s16
      %s19 = ssub.s32 512, %s17
      %20 = vsyncadd [#allocation3], %s19
      %p21 = scmp.ne.s32.totalorder 0, %s17
      %s22 = smul.addr %s15, 128
      %s23 = scalar_lea.hbm %s0, %s22
      %s24 = smul.u32 8, %s16
      %s25 = sshll.u32 [#allocation2], 4
      %s26 = int_to_ptr.vmem [resolvable:$true] %s25
      %s27 = sshll.u32 %s24, 4
      %31 = dma.hbm_to_vmem [thread:$0]  (%p21), %s23, %s27, %s26, [#allocation3], 128, 128, 8
    $region5: #{tpu_custom_call.1} parent=1 // pred_fallthru
      _
    // Predicated region
    $region6: #{tpu_custom_call.1} parent=1 // pred_check
      _
    $region7: #{tpu_custom_call.1} parent=1 // pred_check_branch
      %33 = sbr.rel (0) target = $region9
    $region8: #{tpu_custom_call.1} parent=1 // pred_region
      %s34 = sadd.s32 0, 0
      %p35 = scmp.lt.s32.totalorder %s34, 0
      %s36 = scalar_select %p35, %s34, 0
      %s37 = smul.u32 4, %s36
      %s38 = ssub.s32 2, %s37
      %s39 = smul.u32 128, %s38
      %s41 = ssub.s32 512, %s39
      %42 = vsyncadd [#allocation6], %s41
      %p43 = scmp.ne.s32.totalorder 0, %s39
      %s44 = smul.addr %s37, 128
      %s45 = scalar_lea.hbm %s1, %s44
      %s46 = smul.u32 8, %s38
      %s47 = sshll.u32 [#allocation5], 4
      %s48 = int_to_ptr.vmem [resolvable:$true] %s47
      %s49 = sshll.u32 %s46, 4
      %53 = dma.hbm_to_vmem [thread:$0]  (%p43), %s45, %s49, %s48, [#allocation6], 128, 128, 8
    $region9: #{tpu_custom_call.1} parent=1 // pred_fallthru
      _
    // Predicated region
    $region10: #{tpu_custom_call.1} parent=1 // pred_check
      _
    $region11: #{tpu_custom_call.1} parent=1 // pred_check_branch
      %55 = sbr.rel (0) target = $region13
    $region12: #{tpu_custom_call.1} parent=1 // pred_region
      %56 = dma.done [#allocation3], 512
    $region13: #{tpu_custom_call.1} parent=1 // pred_fallthru
      _
    // Predicated region
    $region14: #{tpu_custom_call.1} parent=1 // pred_check
      _
    $region15: #{tpu_custom_call.1} parent=1 // pred_check_branch
      %58 = sbr.rel (0) target = $region17
    $region16: #{tpu_custom_call.1} parent=1 // pred_region
      %59 = dma.done [#allocation6], 512
    $region17: #{tpu_custom_call.1} parent=1 // pred_fallthru
      _
    %s60 = sadd.s32 0, 0
    %p61 = scmp.lt.s32.totalorder %s60, 0
    %s62 = scalar_select %p61, %s60, 0
    %s63 = smul.u32 4, %s62
    %s64 = ssub.s32 2, %s63
    %s65 = smul.u32 128, %s64
    %s66 = sadd.s32 0, 0
    %p67 = scmp.lt.s32.totalorder %s66, 0
    %s68 = scalar_select %p67, %s66, 0
    %s69 = smul.u32 4, %s68
    %s70 = ssub.s32 2, %s69
    %s71 = smul.u32 128, %s70
    %s72 = sadd.s32 0, 0
    %p73 = scmp.eq.s32.totalorder 0, 0
    // Predicated region
    $region18: #{tpu_custom_call.1} parent=1 // pred_check
      %p74 = pneg %p73
    $region19: #{tpu_custom_call.1} parent=1 // pred_check_branch
      %76 = sbr.rel (%p74) target = $region21
    $region20: #{tpu_custom_call.1} parent=1 // pred_region
      %77 = vst [vmem:[#allocation7] sm:$0xff] 0.0
      %78 = vst [vmem:[#allocation7 + $0x8] sm:$0xff] 0.0
    $region21: #{tpu_custom_call.1} parent=1 // pred_fallthru
      _
    %p79 = scmp.lt.s32.totalorder %s72, 0
    // Predicated region
    $region22: #{tpu_custom_call.1} parent=1 // pred_check
      %p80 = pneg %p79
    $region23: #{tpu_custom_call.1} parent=1 // pred_check_branch
      %82 = sbr.rel (%p80) target = $region25
    $region24: #{tpu_custom_call.1} parent=1 // pred_region
      %v83 = vld [vmem:[#allocation2] sm:$0xff]
      %v84 = vld [vmem:[#allocation2 + $0x8] sm:$0xff]
      %v85 = vld [vmem:[#allocation2 + $0x10] sm:$0xff]
      %v86 = vld [vmem:[#allocation2 + $0x18] sm:$0xff]
      %v87 = vxor.u32 %v83, 2147483648
      %v88 = vxor.u32 %v84, 2147483648
      %v89 = vxor.u32 %v85, 2147483648
      %v90 = vxor.u32 %v86, 2147483648
      %v91 = vmul.f32 %v87, 1.442695
      %v92 = vpow.pop %v91
      %v93 = vmul.f32 %v88, 1.442695
      %v94 = vpow.pop %v93
      %v95 = vmul.f32 %v89, 1.442695
      %v96 = vpow.pop %v95
      %v97 = vmul.f32 %v90, 1.442695
      %v98 = vpow.pop %v97
      %v99 = vadd.f32 %v92, 1.0
      %v100 = vadd.f32 %v94, 1.0
      %v101 = vadd.f32 %v96, 1.0
      %v102 = vadd.f32 %v98, 1.0
      %v103 = vrcp.pop %v99
      %v104 = vmul.f32 1.0, %v103
      %v105 = vrcp.pop %v100
      %v106 = vmul.f32 1.0, %v105
      %v107 = vrcp.pop %v101
      %v108 = vmul.f32 1.0, %v107
      %v109 = vrcp.pop %v102
      %v110 = vmul.f32 1.0, %v109
      %v111 = vld [vmem:[#allocation5] sm:$0xff]
      %v112 = vld [vmem:[#allocation5 + $0x8] sm:$0xff]
      %v113 = vld [vmem:[#allocation5 + $0x10] sm:$0xff]
      %v114 = vld [vmem:[#allocation5 + $0x18] sm:$0xff]
      %v115 = vmul.f32 %v104, %v111
      %v116 = vmul.f32 %v106, %v112
      %v117 = vmul.f32 %v108, %v113
      %v118 = vmul.f32 %v110, %v114
      %v119 = vadd.f32 %v104, %v111
      %v120 = vadd.f32 %v106, %v112
      %v121 = vadd.f32 %v108, %v113
      %v122 = vadd.f32 %v110, %v114
      %v123 = vld [vmem:[#allocation7] sm:$0xff]
      %v124 = vadd.f32 %v115, %v116
      %v125 = vadd.f32 %v124, %v117
      %v126 = vadd.f32 %v125, %v118
      %v127 = vadd.f32 %v123, %v126
      %128 = vst [vmem:[#allocation7] sm:$0xff] %v127
      %s129 = scalar_lea.vmem [#allocation7], 8
      %v130 = vld [vmem:[%s129] sm:$0xff]
      %v131 = vadd.f32 %v119, %v120
      %v132 = vadd.f32 %v131, %v121
      %v133 = vadd.f32 %v132, %v122
      %v134 = vadd.f32 %v130, %v133
      %135 = vst [vmem:[%s129] sm:$0xff] %v134
    $region25: #{tpu_custom_call.1} parent=1 // pred_fallthru
      _
    %p136 = scmp.eq.s32.totalorder %s72, 0
    // Predicated region
    $region26: #{tpu_custom_call.1} parent=1 // pred_check
      %p137 = pneg %p136
    $region27: #{tpu_custom_call.1} parent=1 // pred_check_branch
      %139 = sbr.rel (%p137) target = $region29
    $region28: #{tpu_custom_call.1} parent=1 // pred_region
      %v140 = vld [vmem:[#allocation2] sm:$0xff]
      %v141 = vld [vmem:[#allocation2 + $0x8] sm:$0xff]
      %v142 = vld [vmem:[#allocation2 + $0x10] sm:$0xff]
      %v143 = vld [vmem:[#allocation2 + $0x18] sm:$0xff]
      %v144 = vxor.u32 %v140, 2147483648
      %v145 = vxor.u32 %v141, 2147483648
      %v146 = vxor.u32 %v142, 2147483648
      %v147 = vxor.u32 %v143, 2147483648
      %v148 = vmul.f32 %v144, 1.442695
      %v149 = vpow.pop %v148
      %v150 = vmul.f32 %v145, 1.442695
      %v151 = vpow.pop %v150
      %v152 = vmul.f32 %v146, 1.442695
      %v153 = vpow.pop %v152
      %v154 = vmul.f32 %v147, 1.442695
      %v155 = vpow.pop %v154
      %v156 = vadd.f32 %v149, 1.0
      %v157 = vadd.f32 %v151, 1.0
      %v158 = vadd.f32 %v153, 1.0
      %v159 = vadd.f32 %v155, 1.0
      %v160 = vrcp.pop %v156
      %v161 = vmul.f32 1.0, %v160
      %v162 = vrcp.pop %v157
      %v163 = vmul.f32 1.0, %v162
      %v164 = vrcp.pop %v158
      %v165 = vmul.f32 1.0, %v164
      %v166 = vrcp.pop %v159
      %v167 = vmul.f32 1.0, %v166
      %v168 = vld [vmem:[#allocation5] sm:$0xff]
      %v169 = vld [vmem:[#allocation5 + $0x8] sm:$0xff]
      %v170 = vld [vmem:[#allocation5 + $0x10] sm:$0xff]
      %v171 = vld [vmem:[#allocation5 + $0x18] sm:$0xff]
      %v172 = vlaneseq
      %v173 = vshrl.u32 %v172, 7
      %v174 = vadd.s32 %v173, 8
      %v175 = vadd.s32 %v173, 16
      %v176 = vadd.s32 %v173, 24
      %v177 = vlaneseq
      %v178 = vand.u32 %v177, 127
      %v179 = vmul.u32 %v173, 128
      %v180 = vmul.u32 %v174, 128
      %v181 = vmul.u32 %v175, 128
      %v182 = vmul.u32 %v176, 128
      %v183 = vadd.s32 %v179, %v178
      %v184 = vadd.s32 %v180, %v178
      %v185 = vadd.s32 %v181, %v178
      %v186 = vadd.s32 %v182, %v178
      %vm187 = vcmp.lt.s32.totalorder %v183, 2048
      %vm188 = vcmp.lt.s32.totalorder %v184, 2048
      %vm189 = vcmp.lt.s32.totalorder %v185, 2048
      %vm190 = vcmp.lt.s32.totalorder %v186, 2048
      %v191 = vsel %vm187, %v161, 0.0
      %v192 = vsel %vm188, %v163, 0.0
      %v193 = vsel %vm189, %v165, 0.0
      %v194 = vsel %vm190, %v167, 0.0
      %v195 = vsel %vm187, %v168, 0.0
      %v196 = vsel %vm188, %v169, 0.0
      %v197 = vsel %vm189, %v170, 0.0
      %v198 = vsel %vm190, %v171, 0.0
      %v199 = vmul.f32 %v191, %v195
      %v200 = vmul.f32 %v192, %v196
      %v201 = vmul.f32 %v193, %v197
      %v202 = vmul.f32 %v194, %v198
      %v203 = vadd.f32 %v191, %v195
      %v204 = vadd.f32 %v192, %v196
      %v205 = vadd.f32 %v193, %v197
      %v206 = vadd.f32 %v194, %v198
      %v207 = vld [vmem:[#allocation7] sm:$0xff]
      %v208 = vadd.f32 %v199, %v200
      %v209 = vadd.f32 %v208, %v201
      %v210 = vadd.f32 %v209, %v202
      %v211 = vadd.f32 %v207, %v210
      %212 = vst [vmem:[#allocation7] sm:$0xff] %v211
      %s213 = scalar_lea.vmem [#allocation7], 8
      %v214 = vld [vmem:[%s213] sm:$0xff]
      %v215 = vadd.f32 %v203, %v204
      %v216 = vadd.f32 %v215, %v205
      %v217 = vadd.f32 %v216, %v206
      %v218 = vadd.f32 %v214, %v217
      %219 = vst [vmem:[%s213] sm:$0xff] %v218
    $region29: #{tpu_custom_call.1} parent=1 // pred_fallthru
      _
    // Predicated region
    $region30: #{tpu_custom_call.1} parent=1 // pred_check
      _
    $region31: #{tpu_custom_call.1} parent=1 // pred_check_branch
      %221 = sbr.rel (0) target = $region33
    $region32: #{tpu_custom_call.1} parent=1 // pred_region
      %s223 = ssub.s32 256, 256
      %224 = vsyncadd [#allocation4], %s223
      %s225 = sshll.u32 [#allocation7], 4
      %s226 = int_to_ptr.vmem [resolvable:$true] %s225
      %231 = dma.vmem_to_hbm [thread:$0]  %s226, 256, %s2, [#allocation4], 128, 128, 8
    $region33: #{tpu_custom_call.1} parent=1 // pred_fallthru
      _
    // Predicated region
    $region34: #{tpu_custom_call.1} parent=1 // pred_check
      _
    $region35: #{tpu_custom_call.1} parent=1 // pred_check_branch
      %233 = sbr.rel (0) target = $region37
    $region36: #{tpu_custom_call.1} parent=1 // pred_region
      %234 = dma.done [#allocation4], 256
    $region37: #{tpu_custom_call.1} parent=1 // pred_fallthru
      _
    %235 = vsyncpa [#allocation3], 1
    %236 = vsyncpa [#allocation6], 1
    %237 = vsyncpa [#allocation4], 1

</llo_original>
